<compile_context>
chip_gen: v6e
topology: v6e:2x2x1
jax: 0.10.0
libtpu: 0.0.40
codegen_flags: <defaults>
</compile_context>

<pallas_src>
import numpy as np
import jax
import jax.numpy as jnp
from jax import lax
from jax.experimental import pallas as pl
from jax.experimental.pallas import tpu as pltpu


OUTP = 128  # lane-dense padded FC output width (real outputs are 2)


def _round_up(x, m):
    return ((x + m - 1) // m) * m


# ----------------------------- Pallas kernel -------------------------------
def rnn_fc_kernel(tok_ref,    # (T*Bp, 1) i32  time-major tokens (padded entries = 0)
                  len_ref,    # (Bp, 1)   i32  sequence lengths (padded rows = 0)
                  eproj_ref,  # (Vp, Hp)  f32  emb @ W_ih^T + b_ih + b_hh, zero-padded
                  whh_ref,    # (Hp, Hp)  bf16 W_hh^T, zero-padded
                  wfc_ref,    # (Hp, 128) bf16 W_fc^T, zero-padded
                  bfc_ref,    # (1, 128)  f32  b_fc, zero-padded
                  out_ref):   # (Bp, 128) f32  sigmoid(logits), lane-dense
    TB = tok_ref.shape[0]
    Bp = len_ref.shape[0]
    Vp, Hp = eproj_ref.shape
    T = TB // Bp

    # ---- Phase 1: fused embedding gather + input projection ----------------
    # one_hot(tokens) @ eproj == emb[tokens] @ W_ih^T + (b_ih + b_hh), done as
    # ONE MXU matmul: no dynamic gather, no HBM activation round-trip. Result
    # stays in vregs (TB x Hp f32 = 16 vregs at these sizes), no VMEM scratch.
    toks = tok_ref[...]                                               # (TB, 1)
    onehot = (lax.broadcasted_iota(jnp.int32, (TB, Vp), 1)
              == toks).astype(jnp.float32)                            # (TB, Vp)
    xproj = jnp.dot(onehot, eproj_ref[...],
                    preferred_element_type=jnp.float32)               # (TB, Hp) f32

    # ---- Phase 2: serial recurrence, fully unrolled (T small & static) -----
    lens = len_ref[...]                                               # (Bp, 1), loaded once
    # Hoisted per-step update masks: one iota + one compare for all T steps
    # (pack_padded_sequence semantics: update only while t < length[b]).
    upd = lens > lax.broadcasted_iota(jnp.int32, (Bp, T), 1)          # (Bp, T) bool

    h = jnp.zeros((Bp, Hp), jnp.bfloat16)   # bf16 carry: no cast in front of the MXU push
    for t in range(T):                      # full unroll -> LLO cross-iter overlap
        xp = xproj[t * Bp:(t + 1) * Bp, :]                            # static slice, (Bp, Hp)
        hw = jnp.dot(h, whh_ref[...], preferred_element_type=jnp.float32)
        h_new = jnp.tanh(xp + hw).astype(jnp.bfloat16)                # pre/tanh in f32 for accuracy
        h = jnp.where(upd[:, t:t + 1], h_new, h)                      # bf16 select

    # ---- Phase 3: FC head + sigmoid, lane-dense (Bp, 128) output -----------
    logits = jnp.dot(h, wfc_ref[...], preferred_element_type=jnp.float32) + bfc_ref[...]
    out_ref[...] = jax.nn.sigmoid(logits)


# ------------------- one-time parameter preprocessing -----------------------
def prepare_params(params):
    """Build padded, MXU-aligned, correctly-typed constants ONCE (not per call)."""
    VOCAB, E = params["emb"].shape
    H = params["w_hh"].shape[0]
    Vp = _round_up(max(VOCAB, 128), 128)   # lane-align the one-hot contraction dim
    Hp = _round_up(H, 128)                 # 150 -> 256

    # Pre-project the whole embedding table through the input weights + biases.
    # eproj[v] = emb[v] @ W_ih^T + b_ih + b_hh  (f32, exact same math as per-step).
    eproj = (params["emb"] @ params["w_ih"].T
             + params["b_ih"] + params["b_hh"])                       # (VOCAB, H) f32
    eproj_p = jnp.zeros((Vp, Hp), jnp.float32).at[:VOCAB, :H].set(eproj)

    # Zero padding is load-bearing: padded rows/cols of whh/wfc and padded
    # columns of eproj must be exactly zero so padded hidden lanes stay zero.
    whh_p = (jnp.zeros((Hp, Hp), jnp.float32)
             .at[:H, :H].set(params["w_hh"].T)).astype(jnp.bfloat16)  # (Hp, Hp)
    wfc_p = (jnp.zeros((Hp, OUTP), jnp.float32)
             .at[:H, :2].set(params["w_fc"].T)).astype(jnp.bfloat16)  # (Hp, 128)
    bfc_p = jnp.zeros((1, OUTP), jnp.float32).at[0, :2].set(params["b_fc"])

    return {"eproj": eproj_p, "whh": whh_p, "wfc": wfc_p, "bfc": bfc_p}


# ------------------------------ forward wrapper ------------------------------
@jax.jit
def my_model_forward(seq, lengths, prepped):
    """seq: (T, B) int32 tokens, lengths: (B,) int32. Returns (B, 2) f32."""
    T, B = seq.shape
    Bp = _round_up(max(B, 8), 8)            # 4 -> 8 sublanes

    # Only tiny per-call glue remains: pad the (T,B) tokens / (B,) lengths.
    tok_p = (jnp.zeros((T, Bp), jnp.int32)
             .at[:, :B].set(seq.astype(jnp.int32))).reshape(T * Bp, 1)
    lens_p = jnp.zeros((Bp, 1), jnp.int32).at[:B, 0].set(lengths.astype(jnp.int32))

    vmem = pl.BlockSpec(memory_space=pltpu.MemorySpace.VMEM)
    out_p = pl.pallas_call(
        rnn_fc_kernel,
        out_shape=jax.ShapeDtypeStruct((Bp, OUTP), jnp.float32),
        in_specs=[vmem] * 6,
        out_specs=vmem,
    )(tok_p, lens_p, prepped["eproj"], prepped["whh"], prepped["wfc"], prepped["bfc"])

    # Slice the real (B, 2) out of the padded lane-dense output.
    # (Padded lanes hold sigmoid(0)=0.5 and are dropped here.)
    return out_p[:B, :2]


# --------------------------- pure-JAX reference -----------------------------
def reference_forward(seq, lengths, params):
    T, B = seq.shape
    H = params["w_hh"].shape[0]
    embs = params["emb"][seq]                                     # (T, B, E)
    b = params["b_ih"] + params["b_hh"]
    h = jnp.zeros((B, H), jnp.float32)
    for t in range(T):
        h_new = jnp.tanh(embs[t] @ params["w_ih"].T + h @ params["w_hh"].T + b)
        mask = (t < lengths)[:, None].astype(jnp.float32)
        h = mask * h_new + (1.0 - mask) * h
    return jax.nn.sigmoid(h @ params["w_fc"].T + params["b_fc"])


# ------------------------------- main ---------------------------------------
if __name__ == "__main__":
    # small shapes consistent with the module (embedding_dim=100, n_hidden=150)
    VOCAB, E, H = 50, 100, 150
    T, B = 8, 4

    key = jax.random.PRNGKey(0)
    ks = jax.random.split(key, 8)
    s_rnn = 1.0 / np.sqrt(H)   # PyTorch nn.RNN init scale
    s_fc = 1.0 / np.sqrt(H)    # PyTorch nn.Linear init scale

    params = {
        # nn.Embedding weight (vocab.vectors surrogate). padding_idx=1 row is
        # irrelevant to the output: length-masked steps never update the hidden
        # state past each sequence's length.
        "emb":  jax.random.normal(ks[0], (VOCAB, E), jnp.float32),
        "w_ih": jax.random.uniform(ks[1], (H, E), jnp.float32, -s_rnn, s_rnn),
        "w_hh": jax.random.uniform(ks[2], (H, H), jnp.float32, -s_rnn, s_rnn),
        "b_ih": jax.random.uniform(ks[3], (H,),   jnp.float32, -s_rnn, s_rnn),
        "b_hh": jax.random.uniform(ks[4], (H,),   jnp.float32, -s_rnn, s_rnn),
        "w_fc": jax.random.uniform(ks[5], (2, H), jnp.float32, -s_fc, s_fc),
        "b_fc": jax.random.uniform(ks[6], (2,),   jnp.float32, -s_fc, s_fc),
    }

    # One-time parameter preprocessing (padding, transposes, bf16 casts,
    # embedding pre-projection) — hoisted out of the per-call path.
    prepped = prepare_params(params)
    prepped = jax.tree_util.tree_map(jax.block_until_ready, prepped)

    # tokens (T, B); lengths sorted descending as pack_padded_sequence expects
    seq = jax.random.randint(ks[7], (T, B), 0, VOCAB, dtype=jnp.int32)
    lengths = jnp.array([8, 6, 5, 3], dtype=jnp.int32)

    out = my_model_forward(seq, lengths, prepped)
    out = jax.block_until_ready(out)

    ref = reference_forward(seq, lengths, params)
    assert out.shape == (B, 2)
    np.testing.assert_allclose(np.asarray(out), np.asarray(ref),
                               rtol=2e-2, atol=2e-2)
    print("KERNEL_OK")
</pallas_src>

<mosaic_0001>
module attributes {stable_mosaic.version = 11 : i64} {
  func.func @rnn_fc_kernel(%arg0: memref<64x1xi32, #tpu.memory_space<vmem>>, %arg1: memref<8x1xi32, #tpu.memory_space<vmem>>, %arg2: memref<128x256xf32, #tpu.memory_space<vmem>>, %arg3: memref<256x256xbf16, #tpu.memory_space<vmem>>, %arg4: memref<256x128xbf16, #tpu.memory_space<vmem>>, %arg5: memref<1x128xf32, #tpu.memory_space<vmem>>, %arg6: memref<8x128xf32, #tpu.memory_space<vmem>>) attributes {dimension_semantics = [], scalar_prefetch = 0 : i64, scratch_operands = 0 : i64, tpu.core_type = #tpu.core_type<tc>} {
    %c0 = arith.constant 0 : index
    %c0_0 = arith.constant 0 : index
    %0 = vector.load %arg0[%c0, %c0_0] : memref<64x1xi32, #tpu.memory_space<vmem>>, vector<64x1xi32>
    %1 = tpu.iota {dimensions = array<i32: 1>} : vector<64x128xi32>
    %2 = vector.broadcast %0 : vector<64x1xi32> to vector<64x128xi32>
    %3 = arith.cmpi eq, %1, %2 : vector<64x128xi32>
    %4 = arith.extui %3 : vector<64x128xi1> to vector<64x128xi32>
    %5 = arith.sitofp %4 : vector<64x128xi32> to vector<64x128xf32>
    %c0_1 = arith.constant 0 : index
    %c0_2 = arith.constant 0 : index
    %6 = vector.load %arg2[%c0_1, %c0_2] : memref<128x256xf32, #tpu.memory_space<vmem>>, vector<128x256xf32>
    %cst = arith.constant dense<0.000000e+00> : vector<64x256xf32>
    %7 = tpu.matmul %5, %6, %cst {dimension_numbers = #tpu.dot_dimension_numbers<[1], [0], [0], [1], [0, 0, 1, 1], [], []>} : vector<64x128xf32>, vector<128x256xf32>, vector<64x256xf32> -> vector<64x256xf32>
    %c0_3 = arith.constant 0 : index
    %c0_4 = arith.constant 0 : index
    %8 = vector.load %arg1[%c0_3, %c0_4] : memref<8x1xi32, #tpu.memory_space<vmem>>, vector<8x1xi32>
    %9 = tpu.iota {dimensions = array<i32: 1>} : vector<8x8xi32>
    %10 = vector.broadcast %8 : vector<8x1xi32> to vector<8x8xi32>
    %11 = arith.cmpi sgt, %10, %9 : vector<8x8xi32>
    %cst_5 = arith.constant 0.000000e+00 : bf16
    %12 = vector.broadcast %cst_5 : bf16 to vector<8x256xbf16>
    %13 = vector.extract_strided_slice %7 {offsets = [0, 0], sizes = [8, 256], strides = [1, 1]} : vector<64x256xf32> to vector<8x256xf32>
    %c0_6 = arith.constant 0 : index
    %c0_7 = arith.constant 0 : index
    %14 = vector.load %arg3[%c0_6, %c0_7] : memref<256x256xbf16, #tpu.memory_space<vmem>>, vector<256x256xbf16>
    %cst_8 = arith.constant dense<0.000000e+00> : vector<8x256xf32>
    %15 = tpu.matmul %12, %14, %cst_8 {dimension_numbers = #tpu.dot_dimension_numbers<[1], [0], [0], [1], [0, 0, 1, 1], [], []>} : vector<8x256xbf16>, vector<256x256xbf16>, vector<8x256xf32> -> vector<8x256xf32>
    %16 = arith.addf %13, %15 : vector<8x256xf32>
    %17 = math.tanh %16 : vector<8x256xf32>
    %18 = arith.truncf %17 : vector<8x256xf32> to vector<8x256xbf16>
    %19 = vector.extract_strided_slice %11 {offsets = [0, 0], sizes = [8, 1], strides = [1, 1]} : vector<8x8xi1> to vector<8x1xi1>
    %20 = vector.shape_cast %19 : vector<8x1xi1> to vector<8x1xi1>
    %21 = vector.broadcast %20 : vector<8x1xi1> to vector<8x256xi1>
    %22 = arith.select %21, %18, %12 : vector<8x256xi1>, vector<8x256xbf16>
    %23 = vector.extract_strided_slice %7 {offsets = [8, 0], sizes = [8, 256], strides = [1, 1]} : vector<64x256xf32> to vector<8x256xf32>
    %c0_9 = arith.constant 0 : index
    %c0_10 = arith.constant 0 : index
    %24 = vector.load %arg3[%c0_9, %c0_10] : memref<256x256xbf16, #tpu.memory_space<vmem>>, vector<256x256xbf16>
    %cst_11 = arith.constant dense<0.000000e+00> : vector<8x256xf32>
    %25 = tpu.matmul %22, %24, %cst_11 {dimension_numbers = #tpu.dot_dimension_numbers<[1], [0], [0], [1], [0, 0, 1, 1], [], []>} : vector<8x256xbf16>, vector<256x256xbf16>, vector<8x256xf32> -> vector<8x256xf32>
    %26 = arith.addf %23, %25 : vector<8x256xf32>
    %27 = math.tanh %26 : vector<8x256xf32>
    %28 = arith.truncf %27 : vector<8x256xf32> to vector<8x256xbf16>
    %29 = vector.extract_strided_slice %11 {offsets = [0, 1], sizes = [8, 1], strides = [1, 1]} : vector<8x8xi1> to vector<8x1xi1>
    %30 = vector.shape_cast %29 : vector<8x1xi1> to vector<8x1xi1>
    %31 = vector.broadcast %30 : vector<8x1xi1> to vector<8x256xi1>
    %32 = arith.select %31, %28, %22 : vector<8x256xi1>, vector<8x256xbf16>
    %33 = vector.extract_strided_slice %7 {offsets = [16, 0], sizes = [8, 256], strides = [1, 1]} : vector<64x256xf32> to vector<8x256xf32>
    %c0_12 = arith.constant 0 : index
    %c0_13 = arith.constant 0 : index
    %34 = vector.load %arg3[%c0_12, %c0_13] : memref<256x256xbf16, #tpu.memory_space<vmem>>, vector<256x256xbf16>
    %cst_14 = arith.constant dense<0.000000e+00> : vector<8x256xf32>
    %35 = tpu.matmul %32, %34, %cst_14 {dimension_numbers = #tpu.dot_dimension_numbers<[1], [0], [0], [1], [0, 0, 1, 1], [], []>} : vector<8x256xbf16>, vector<256x256xbf16>, vector<8x256xf32> -> vector<8x256xf32>
    %36 = arith.addf %33, %35 : vector<8x256xf32>
    %37 = math.tanh %36 : vector<8x256xf32>
    %38 = arith.truncf %37 : vector<8x256xf32> to vector<8x256xbf16>
    %39 = vector.extract_strided_slice %11 {offsets = [0, 2], sizes = [8, 1], strides = [1, 1]} : vector<8x8xi1> to vector<8x1xi1>
    %40 = vector.shape_cast %39 : vector<8x1xi1> to vector<8x1xi1>
    %41 = vector.broadcast %40 : vector<8x1xi1> to vector<8x256xi1>
    %42 = arith.select %41, %38, %32 : vector<8x256xi1>, vector<8x256xbf16>
    %43 = vector.extract_strided_slice %7 {offsets = [24, 0], sizes = [8, 256], strides = [1, 1]} : vector<64x256xf32> to vector<8x256xf32>
    %c0_15 = arith.constant 0 : index
    %c0_16 = arith.constant 0 : index
    %44 = vector.load %arg3[%c0_15, %c0_16] : memref<256x256xbf16, #tpu.memory_space<vmem>>, vector<256x256xbf16>
    %cst_17 = arith.constant dense<0.000000e+00> : vector<8x256xf32>
    %45 = tpu.matmul %42, %44, %cst_17 {dimension_numbers = #tpu.dot_dimension_numbers<[1], [0], [0], [1], [0, 0, 1, 1], [], []>} : vector<8x256xbf16>, vector<256x256xbf16>, vector<8x256xf32> -> vector<8x256xf32>
    %46 = arith.addf %43, %45 : vector<8x256xf32>
    %47 = math.tanh %46 : vector<8x256xf32>
    %48 = arith.truncf %47 : vector<8x256xf32> to vector<8x256xbf16>
    %49 = vector.extract_strided_slice %11 {offsets = [0, 3], sizes = [8, 1], strides = [1, 1]} : vector<8x8xi1> to vector<8x1xi1>
    %50 = vector.shape_cast %49 : vector<8x1xi1> to vector<8x1xi1>
    %51 = vector.broadcast %50 : vector<8x1xi1> to vector<8x256xi1>
    %52 = arith.select %51, %48, %42 : vector<8x256xi1>, vector<8x256xbf16>
    %53 = vector.extract_strided_slice %7 {offsets = [32, 0], sizes = [8, 256], strides = [1, 1]} : vector<64x256xf32> to vector<8x256xf32>
    %c0_18 = arith.constant 0 : index
    %c0_19 = arith.constant 0 : index
    %54 = vector.load %arg3[%c0_18, %c0_19] : memref<256x256xbf16, #tpu.memory_space<vmem>>, vector<256x256xbf16>
    %cst_20 = arith.constant dense<0.000000e+00> : vector<8x256xf32>
    %55 = tpu.matmul %52, %54, %cst_20 {dimension_numbers = #tpu.dot_dimension_numbers<[1], [0], [0], [1], [0, 0, 1, 1], [], []>} : vector<8x256xbf16>, vector<256x256xbf16>, vector<8x256xf32> -> vector<8x256xf32>
    %56 = arith.addf %53, %55 : vector<8x256xf32>
    %57 = math.tanh %56 : vector<8x256xf32>
    %58 = arith.truncf %57 : vector<8x256xf32> to vector<8x256xbf16>
    %59 = vector.extract_strided_slice %11 {offsets = [0, 4], sizes = [8, 1], strides = [1, 1]} : vector<8x8xi1> to vector<8x1xi1>
    %60 = vector.shape_cast %59 : vector<8x1xi1> to vector<8x1xi1>
    %61 = vector.broadcast %60 : vector<8x1xi1> to vector<8x256xi1>
    %62 = arith.select %61, %58, %52 : vector<8x256xi1>, vector<8x256xbf16>
    %63 = vector.extract_strided_slice %7 {offsets = [40, 0], sizes = [8, 256], strides = [1, 1]} : vector<64x256xf32> to vector<8x256xf32>
    %c0_21 = arith.constant 0 : index
    %c0_22 = arith.constant 0 : index
    %64 = vector.load %arg3[%c0_21, %c0_22] : memref<256x256xbf16, #tpu.memory_space<vmem>>, vector<256x256xbf16>
    %cst_23 = arith.constant dense<0.000000e+00> : vector<8x256xf32>
    %65 = tpu.matmul %62, %64, %cst_23 {dimension_numbers = #tpu.dot_dimension_numbers<[1], [0], [0], [1], [0, 0, 1, 1], [], []>} : vector<8x256xbf16>, vector<256x256xbf16>, vector<8x256xf32> -> vector<8x256xf32>
    %66 = arith.addf %63, %65 : vector<8x256xf32>
    %67 = math.tanh %66 : vector<8x256xf32>
    %68 = arith.truncf %67 : vector<8x256xf32> to vector<8x256xbf16>
    %69 = vector.extract_strided_slice %11 {offsets = [0, 5], sizes = [8, 1], strides = [1, 1]} : vector<8x8xi1> to vector<8x1xi1>
    %70 = vector.shape_cast %69 : vector<8x1xi1> to vector<8x1xi1>
    %71 = vector.broadcast %70 : vector<8x1xi1> to vector<8x256xi1>
    %72 = arith.select %71, %68, %62 : vector<8x256xi1>, vector<8x256xbf16>
    %73 = vector.extract_strided_slice %7 {offsets = [48, 0], sizes = [8, 256], strides = [1, 1]} : vector<64x256xf32> to vector<8x256xf32>
    %c0_24 = arith.constant 0 : index
    %c0_25 = arith.constant 0 : index
    %74 = vector.load %arg3[%c0_24, %c0_25] : memref<256x256xbf16, #tpu.memory_space<vmem>>, vector<256x256xbf16>
    %cst_26 = arith.constant dense<0.000000e+00> : vector<8x256xf32>
    %75 = tpu.matmul %72, %74, %cst_26 {dimension_numbers = #tpu.dot_dimension_numbers<[1], [0], [0], [1], [0, 0, 1, 1], [], []>} : vector<8x256xbf16>, vector<256x256xbf16>, vector<8x256xf32> -> vector<8x256xf32>
    %76 = arith.addf %73, %75 : vector<8x256xf32>
    %77 = math.tanh %76 : vector<8x256xf32>
    %78 = arith.truncf %77 : vector<8x256xf32> to vector<8x256xbf16>
    %79 = vector.extract_strided_slice %11 {offsets = [0, 6], sizes = [8, 1], strides = [1, 1]} : vector<8x8xi1> to vector<8x1xi1>
    %80 = vector.shape_cast %79 : vector<8x1xi1> to vector<8x1xi1>
    %81 = vector.broadcast %80 : vector<8x1xi1> to vector<8x256xi1>
    %82 = arith.select %81, %78, %72 : vector<8x256xi1>, vector<8x256xbf16>
    %83 = vector.extract_strided_slice %7 {offsets = [56, 0], sizes = [8, 256], strides = [1, 1]} : vector<64x256xf32> to vector<8x256xf32>
    %c0_27 = arith.constant 0 : index
    %c0_28 = arith.constant 0 : index
    %84 = vector.load %arg3[%c0_27, %c0_28] : memref<256x256xbf16, #tpu.memory_space<vmem>>, vector<256x256xbf16>
    %cst_29 = arith.constant dense<0.000000e+00> : vector<8x256xf32>
    %85 = tpu.matmul %82, %84, %cst_29 {dimension_numbers = #tpu.dot_dimension_numbers<[1], [0], [0], [1], [0, 0, 1, 1], [], []>} : vector<8x256xbf16>, vector<256x256xbf16>, vector<8x256xf32> -> vector<8x256xf32>
    %86 = arith.addf %83, %85 : vector<8x256xf32>
    %87 = math.tanh %86 : vector<8x256xf32>
    %88 = arith.truncf %87 : vector<8x256xf32> to vector<8x256xbf16>
    %89 = vector.extract_strided_slice %11 {offsets = [0, 7], sizes = [8, 1], strides = [1, 1]} : vector<8x8xi1> to vector<8x1xi1>
    %90 = vector.shape_cast %89 : vector<8x1xi1> to vector<8x1xi1>
    %91 = vector.broadcast %90 : vector<8x1xi1> to vector<8x256xi1>
    %92 = arith.select %91, %88, %82 : vector<8x256xi1>, vector<8x256xbf16>
    %c0_30 = arith.constant 0 : index
    %c0_31 = arith.constant 0 : index
    %93 = vector.load %arg4[%c0_30, %c0_31] : memref<256x128xbf16, #tpu.memory_space<vmem>>, vector<256x128xbf16>
    %cst_32 = arith.constant dense<0.000000e+00> : vector<8x128xf32>
    %94 = tpu.matmul %92, %93, %cst_32 {dimension_numbers = #tpu.dot_dimension_numbers<[1], [0], [0], [1], [0, 0, 1, 1], [], []>} : vector<8x256xbf16>, vector<256x128xbf16>, vector<8x128xf32> -> vector<8x128xf32>
    %c0_33 = arith.constant 0 : index
    %c0_34 = arith.constant 0 : index
    %95 = vector.load %arg5[%c0_33, %c0_34] : memref<1x128xf32, #tpu.memory_space<vmem>>, vector<1x128xf32>
    %96 = vector.broadcast %95 : vector<1x128xf32> to vector<8x128xf32>
    %97 = arith.addf %94, %96 : vector<8x128xf32>
    %98 = arith.negf %97 : vector<8x128xf32>
    %99 = math.exp %98 : vector<8x128xf32>
    %cst_35 = arith.constant 1.000000e+00 : f32
    %100 = vector.broadcast %cst_35 : f32 to vector<8x128xf32>
    %101 = arith.addf %100, %99 : vector<8x128xf32>
    %102 = arith.divf %100, %101 : vector<8x128xf32>
    %c0_36 = arith.constant 0 : index
    %c0_37 = arith.constant 0 : index
    %103 = vector.load %arg6[%c0_36, %c0_37] : memref<8x128xf32, #tpu.memory_space<vmem>>, vector<8x128xf32>
    tpu.vector_store %arg6[%c0_36, %c0_37], %102 {strides = array<i32>} : memref<8x128xf32, #tpu.memory_space<vmem>>, vector<8x128xf32>,
    return
  }
}

</mosaic_0001>

<llo_original>
// kernel: my_model_forward.1
$region0: #{my_model_forward.1}
  #allocation0 [shape = 'u32[]', space=smem, size = 0x4, offset = 0x4, fixed_abs, tag = 'smem constant byte address 0x4 - core index']
  #allocation1 [shape = 'u32[144,128]{1,0:T(1,128)}', space=vmem, size = 0x12000, scoped, tag = 'internal scratch']
  %s0 = inlined_call_operand.vmem [shape: s32[64,1], index: 0, kind: input, shape index: {}]
  %s1 = inlined_call_operand.vmem [shape: s32[8,1], index: 1, kind: input, shape index: {}]
  %s2 = inlined_call_operand.hbm [shape: f32[128,256], index: 2, kind: input, shape index: {}]
  %s3 = inlined_call_operand.hbm [shape: bf16[256,256], index: 3, kind: input, shape index: {}]
  %s4 = inlined_call_operand.vmem [shape: bf16[256,128], index: 4, kind: input, shape index: {}]
  %s5 = inlined_call_operand.vmem [shape: f32[1,128], index: 5, kind: input, shape index: {}]
  %s6 = inlined_call_operand.vmem [shape: f32[8,128], index: 6, kind: output, shape index: {}]
  %s7 = sld [smem:[#allocation0]]
  $region42: #{my_model_forward.1} parent=0
    _
  %s9 = ssub.s32 1, %s7
  %s10 = scalar_select 0, %s9, %s7
  $region1: #{my_model_forward.1} parent=0
    #allocation2 [shape = 'u8[131072]{0}', space=vmem, size = 0x20000, scoped, tag = 'input window, operand 2, single buffered']
    #allocation3 [shape = 's32[1]{0}', space=sflag, size = 0x4, scoped, tag = 'scoped memory for my_model_forward.1']
    #allocation4 [shape = 'u8[131072]{0}', space=vmem, size = 0x20000, scoped, tag = 'input window, operand 3, single buffered']
    #allocation5 [shape = 's32[1]{0}', space=sflag, size = 0x4, scoped, tag = 'scoped memory for my_model_forward.1']
    %11 = vsyncpa [#allocation3], 0
    %12 = vsyncpa [#allocation5], 0
    // Predicated region
    $region2: #{my_model_forward.1} parent=1 // pred_check
      _
    $region3: #{my_model_forward.1} parent=1 // pred_check_branch
      %14 = sbr.rel (0) target = $region5
    $region4: #{my_model_forward.1} parent=1 // pred_region
      _
    $region5: #{my_model_forward.1} parent=1 // pred_fallthru
      _
    // Predicated region
    $region6: #{my_model_forward.1} parent=1 // pred_check
      _
    $region7: #{my_model_forward.1} parent=1 // pred_check_branch
      %16 = sbr.rel (0) target = $region9
    $region8: #{my_model_forward.1} parent=1 // pred_region
      _
    $region9: #{my_model_forward.1} parent=1 // pred_fallthru
      _
    // Predicated region
    $region10: #{my_model_forward.1} parent=1 // pred_check
      _
    $region11: #{my_model_forward.1} parent=1 // pred_check_branch
      %18 = sbr.rel (0) target = $region13
    $region12: #{my_model_forward.1} parent=1 // pred_region
      %s20 = ssub.s32 4096, 4096
      %21 = vsyncadd [#allocation3], %s20
      %s22 = sshll.u32 [#allocation2], 4
      %s23 = int_to_ptr.vmem [resolvable:$true] %s22
      %28 = dma.hbm_to_vmem [thread:$0]  %s2, 4096, %s23, [#allocation3], 256, 256, 16
    $region13: #{my_model_forward.1} parent=1 // pred_fallthru
      _
    // Predicated region
    $region14: #{my_model_forward.1} parent=1 // pred_check
      _
    $region15: #{my_model_forward.1} parent=1 // pred_check_branch
      %30 = sbr.rel (0) target = $region17
    $region16: #{my_model_forward.1} parent=1 // pred_region
      %s32 = ssub.s32 4096, 4096
      %33 = vsyncadd [#allocation5], %s32
      %s34 = sshll.u32 [#allocation4], 4
      %s35 = int_to_ptr.vmem [resolvable:$true] %s34
      %40 = dma.hbm_to_vmem [thread:$0]  %s3, 4096, %s35, [#allocation5], 128, 128, 8
    $region17: #{my_model_forward.1} parent=1 // pred_fallthru
      _
    // Predicated region
    $region18: #{my_model_forward.1} parent=1 // pred_check
      _
    $region19: #{my_model_forward.1} parent=1 // pred_check_branch
      %42 = sbr.rel (0) target = $region21
    $region20: #{my_model_forward.1} parent=1 // pred_region
      _
    $region21: #{my_model_forward.1} parent=1 // pred_fallthru
      _
    // Predicated region
    $region22: #{my_model_forward.1} parent=1 // pred_check
      _
    $region23: #{my_model_forward.1} parent=1 // pred_check_branch
      %44 = sbr.rel (0) target = $region25
    $region24: #{my_model_forward.1} parent=1 // pred_region
      _
    $region25: #{my_model_forward.1} parent=1 // pred_fallthru
      _
    // Predicated region
    $region26: #{my_model_forward.1} parent=1 // pred_check
      _
    $region27: #{my_model_forward.1} parent=1 // pred_check_branch
      %46 = sbr.rel (0) target = $region29
    $region28: #{my_model_forward.1} parent=1 // pred_region
      %47 = dma.done [#allocation3], 4096
    $region29: #{my_model_forward.1} parent=1 // pred_fallthru
      _
    // Predicated region
    $region30: #{my_model_forward.1} parent=1 // pred_check
      _
    $region31: #{my_model_forward.1} parent=1 // pred_check_branch
      %49 = sbr.rel (0) target = $region33
    $region32: #{my_model_forward.1} parent=1 // pred_region
      %50 = dma.done [#allocation5], 4096
    $region33: #{my_model_forward.1} parent=1 // pred_fallthru
      _
    %v54 = vld [vmem:[%s0] sm:$0xff]
    %v55 = vld [vmem:[%s0 + $0x8] sm:$0xff]
    %v56 = vld [vmem:[%s0 + $0x10] sm:$0xff]
    %v57 = vld [vmem:[%s0 + $0x18] sm:$0xff]
    %v58 = vld [vmem:[%s0 + $0x20] sm:$0xff]
    %v59 = vld [vmem:[%s0 + $0x28] sm:$0xff]
    %v60 = vld [vmem:[%s0 + $0x30] sm:$0xff]
    %v61 = vld [vmem:[%s0 + $0x38] sm:$0xff]
    %v62 = vlaneseq
    %v63 = vand.u32 %v62, 127
    %64 = vset.pattern.permute.xlu0 0
    %65 = vperm.xlu0 %64, %v54
    %v66 = vpop.permute.xlu0 %65
    %67 = vset.pattern.permute.xlu0 0
    %68 = vperm.xlu0 %67, %v55
    %v69 = vpop.permute.xlu0 %68
    %70 = vset.pattern.permute.xlu0 0
    %71 = vperm.xlu0 %70, %v56
    %v72 = vpop.permute.xlu0 %71
    %73 = vset.pattern.permute.xlu0 0
    %74 = vperm.xlu0 %73, %v57
    %v75 = vpop.permute.xlu0 %74
    %76 = vset.pattern.permute.xlu0 0
    %77 = vperm.xlu0 %76, %v58
    %v78 = vpop.permute.xlu0 %77
    %79 = vset.pattern.permute.xlu0 0
    %80 = vperm.xlu0 %79, %v59
    %v81 = vpop.permute.xlu0 %80
    %82 = vset.pattern.permute.xlu0 0
    %83 = vperm.xlu0 %82, %v60
    %v84 = vpop.permute.xlu0 %83
    %85 = vset.pattern.permute.xlu0 0
    %86 = vperm.xlu0 %85, %v61
    %v87 = vpop.permute.xlu0 %86
    %vm88 = vcmp.eq.s32.totalorder %v63, %v66
    %vm89 = vcmp.eq.s32.totalorder %v63, %v69
    %vm90 = vcmp.eq.s32.totalorder %v63, %v72
    %vm91 = vcmp.eq.s32.totalorder %v63, %v75
    %vm92 = vcmp.eq.s32.totalorder %v63, %v78
    %vm93 = vcmp.eq.s32.totalorder %v63, %v81
    %vm94 = vcmp.eq.s32.totalorder %v63, %v84
    %vm95 = vcmp.eq.s32.totalorder %v63, %v87
    %v96 = vsel %vm88, 1, 0
    %v97 = vsel %vm89, 1, 0
    %v98 = vsel %vm90, 1, 0
    %v99 = vsel %vm91, 1, 0
    %v100 = vsel %vm92, 1, 0
    %v101 = vsel %vm93, 1, 0
    %v102 = vsel %vm94, 1, 0
    %v103 = vsel %vm95, 1, 0
    %v104 = vcvt.s32.f32 %v96
    %v105 = vcvt.s32.f32 %v97
    %v106 = vcvt.s32.f32 %v98
    %v107 = vcvt.s32.f32 %v99
    %v108 = vcvt.s32.f32 %v100
    %v109 = vcvt.s32.f32 %v101
    %v110 = vcvt.s32.f32 %v102
    %v111 = vcvt.s32.f32 %v103
    %v112 = vld [vmem:[#allocation2] sm:$0xff]
    %v113 = vld [vmem:[#allocation2 + $0x8] sm:$0xff]
    %v114 = vld [vmem:[#allocation2 + $0x10] sm:$0xff]
    %v115 = vld [vmem:[#allocation2 + $0x18] sm:$0xff]
    %v116 = vld [vmem:[#allocation2 + $0x20] sm:$0xff]
    %v117 = vld [vmem:[#allocation2 + $0x28] sm:$0xff]
    %v118 = vld [vmem:[#allocation2 + $0x30] sm:$0xff]
    %v119 = vld [vmem:[#allocation2 + $0x38] sm:$0xff]
    %v120 = vld [vmem:[#allocation2 + $0x40] sm:$0xff]
    %v121 = vld [vmem:[#allocation2 + $0x48] sm:$0xff]
    %v122 = vld [vmem:[#allocation2 + $0x50] sm:$0xff]
    %v123 = vld [vmem:[#allocation2 + $0x58] sm:$0xff]
    %v124 = vld [vmem:[#allocation2 + $0x60] sm:$0xff]
    %v125 = vld [vmem:[#allocation2 + $0x68] sm:$0xff]
    %v126 = vld [vmem:[#allocation2 + $0x70] sm:$0xff]
    %v127 = vld [vmem:[#allocation2 + $0x78] sm:$0xff]
    %v128 = vld [vmem:[#allocation2 + $0x80] sm:$0xff]
    %v129 = vld [vmem:[#allocation2 + $0x88] sm:$0xff]
    %v130 = vld [vmem:[#allocation2 + $0x90] sm:$0xff]
    %v131 = vld [vmem:[#allocation2 + $0x98] sm:$0xff]
    %v132 = vld [vmem:[#allocation2 + $0xa0] sm:$0xff]
    %v133 = vld [vmem:[#allocation2 + $0xa8] sm:$0xff]
    %v134 = vld [vmem:[#allocation2 + $0xb0] sm:$0xff]
    %v135 = vld [vmem:[#allocation2 + $0xb8] sm:$0xff]
    %v136 = vld [vmem:[#allocation2 + $0xc0] sm:$0xff]
    %v137 = vld [vmem:[#allocation2 + $0xc8] sm:$0xff]
    %v138 = vld [vmem:[#allocation2 + $0xd0] sm:$0xff]
    %v139 = vld [vmem:[#allocation2 + $0xd8] sm:$0xff]
    %v140 = vld [vmem:[#allocation2 + $0xe0] sm:$0xff]
    %v141 = vld [vmem:[#allocation2 + $0xe8] sm:$0xff]
    %v142 = vld [vmem:[#allocation2 + $0xf0] sm:$0xff]
    %v143 = vld [vmem:[#allocation2 + $0xf8] sm:$0xff]
    %144 = vmatprep.subr.mxu0 %v143
    %145 = vmatpush1.msra.mxu0 %v142
    %146 = vmatprep.subr.mxu0 %v141
    %147 = vmatpush1.msra.mxu0 %v140
    %148 = vmatprep.subr.mxu0 %v139
    %149 = vmatpush1.msra.mxu0 %v138
    %150 = vmatprep.subr.mxu0 %v137
    %151 = vmatpush1.msra.mxu0 %v136
    %152 = vmatprep.subr.mxu0 %v135
    %153 = vmatpush1.msra.mxu0 %v134
    %154 = vmatprep.subr.mxu0 %v133
    %155 = vmatpush1.msra.mxu0 %v132
    %156 = vmatprep.subr.mxu0 %v131
    %157 = vmatpush1.msra.mxu0 %v130
    %158 = vmatprep.subr.mxu0 %v129
    %159 = vmatpush1.msra.mxu0 %v128
    %160 = vmatprep.subr.mxu0 %v127
    %161 = vmatpush1.msra.mxu0 %v126
    %162 = vmatprep.subr.mxu0 %v125
    %163 = vmatpush1.msra.mxu0 %v124
    %164 = vmatprep.subr.mxu0 %v123
    %165 = vmatpush1.msra.mxu0 %v122
    %166 = vmatprep.subr.mxu0 %v121
    %167 = vmatpush1.msra.mxu0 %v120
    %168 = vmatprep.subr.mxu0 %v119
    %169 = vmatpush1.msra.mxu0 %v118
    %170 = vmatprep.subr.mxu0 %v117
    %171 = vmatpush1.msra.mxu0 %v116
    %172 = vmatprep.subr.mxu0 %v115
    %173 = vmatpush1.msra.mxu0 %v114
    %174 = vmatprep.subr.mxu0 %v113
    %175 = vmatpush1.msra.mxu0 %v112
    %176 = vmatprep.subr.mxu0 0.0
    %177 = vmatpush2.msra.mxu0 0.0
    %178 = vmatprep.subr.mxu0 0.0
    %179 = vmatpush2.msra.mxu0 0.0
    %180 = vmatprep.subr.mxu0 0.0
    %181 = vmatpush2.msra.mxu0 0.0
    %182 = vmatprep.subr.mxu0 0.0
    %183 = vmatpush2.msra.mxu0 0.0
    %184 = vmatprep.subr.mxu0 0.0
    %185 = vmatpush2.msra.mxu0 0.0
    %186 = vmatprep.subr.mxu0 0.0
    %187 = vmatpush2.msra.mxu0 0.0
    %188 = vmatprep.subr.mxu0 0.0
    %189 = vmatpush2.msra.mxu0 0.0
    %190 = vmatprep.subr.mxu0 0.0
    %191 = vmatpush2.msra.mxu0 0.0
    %192 = vmatprep.subr.mxu0 0.0
    %193 = vmatpush2.msra.mxu0 0.0
    %194 = vmatprep.subr.mxu0 0.0
    %195 = vmatpush2.msra.mxu0 0.0
    %196 = vmatprep.subr.mxu0 0.0
    %197 = vmatpush2.msra.mxu0 0.0
    %198 = vmatprep.subr.mxu0 0.0
    %199 = vmatpush2.msra.mxu0 0.0
    %200 = vmatprep.subr.mxu0 0.0
    %201 = vmatpush2.msra.mxu0 0.0
    %202 = vmatprep.subr.mxu0 0.0
    %203 = vmatpush2.msra.mxu0 0.0
    %204 = vmatprep.subr.mxu0 0.0
    %205 = vmatpush2.msra.mxu0 0.0
    %206 = vmatprep.subr.mxu0 0.0
    %207 = vmatpush2.msra.mxu0 0.0
    %208 = vmatprep.mubr.f32.mxu0 0.0
    %209 = vmatmul.mubr.f32.gmra.mxu0 %v104
    %v210 = vpop.f32.mrf.mxu0
    %v211 = vadd.f32 0.0, %v210
    %v212 = vpop.f32.mrf.mxu0
    %v213 = vadd.f32 0.0, %v212
    %214 = vmatprep.mubr.f32.mxu0 0.0
    %215 = vmatmul.mubr.f32.gmra.mxu0 %v105
    %v216 = vpop.f32.mrf.mxu0
    %v217 = vadd.f32 0.0, %v216
    %v218 = vpop.f32.mrf.mxu0
    %v219 = vadd.f32 0.0, %v218
    %220 = vmatprep.mubr.f32.mxu0 0.0
    %221 = vmatmul.mubr.f32.gmra.mxu0 %v106
    %v222 = vpop.f32.mrf.mxu0
    %v223 = vadd.f32 0.0, %v222
    %v224 = vpop.f32.mrf.mxu0
    %v225 = vadd.f32 0.0, %v224
    %226 = vmatprep.mubr.f32.mxu0 0.0
    %227 = vmatmul.mubr.f32.gmra.mxu0 %v107
    %v228 = vpop.f32.mrf.mxu0
    %v229 = vadd.f32 0.0, %v228
    %v230 = vpop.f32.mrf.mxu0
    %v231 = vadd.f32 0.0, %v230
    %232 = vmatprep.mubr.f32.mxu0 0.0
    %233 = vmatmul.mubr.f32.gmra.mxu0 %v108
    %v234 = vpop.f32.mrf.mxu0
    %v235 = vadd.f32 0.0, %v234
    %v236 = vpop.f32.mrf.mxu0
    %v237 = vadd.f32 0.0, %v236
    %238 = vmatprep.mubr.f32.mxu0 0.0
    %239 = vmatmul.mubr.f32.gmra.mxu0 %v109
    %v240 = vpop.f32.mrf.mxu0
    %v241 = vadd.f32 0.0, %v240
    %v242 = vpop.f32.mrf.mxu0
    %v243 = vadd.f32 0.0, %v242
    %244 = vmatprep.mubr.f32.mxu0 0.0
    %245 = vmatmul.mubr.f32.gmra.mxu0 %v110
    %v246 = vpop.f32.mrf.mxu0
    %v247 = vadd.f32 0.0, %v246
    %v248 = vpop.f32.mrf.mxu0
    %v249 = vadd.f32 0.0, %v248
    %250 = vmatprep.mubr.f32.mxu0 0.0
    %251 = vmatmul.mubr.f32.gmra.mxu0 %v111
    %v252 = vpop.f32.mrf.mxu0
    %v253 = vadd.f32 0.0, %v252
    %v254 = vpop.f32.mrf.mxu0
    %v255 = vadd.f32 0.0, %v254
    %256 = vdwg.mxu0
    %v257 = vld [vmem:[%s1] sm:$0xff]
    %258 = vset.pattern.permute.xlu0 0
    %259 = vperm.xlu0 %258, %v257
    %v260 = vpop.permute.xlu0 %259
    %vm261 = vcmp.gt.s32.totalorder %v260, %v63
    %v262 = vld [vmem:[#allocation4] sm:$0xff]
    %v263 = vld [vmem:[#allocation4 + $0x8] sm:$0xff]
    %v264 = vld [vmem:[#allocation4 + $0x10] sm:$0xff]
    %v265 = vld [vmem:[#allocation4 + $0x18] sm:$0xff]
    %v266 = vld [vmem:[#allocation4 + $0x20] sm:$0xff]
    %v267 = vld [vmem:[#allocation4 + $0x28] sm:$0xff]
    %v268 = vld [vmem:[#allocation4 + $0x30] sm:$0xff]
    %v269 = vld [vmem:[#allocation4 + $0x38] sm:$0xff]
    %v270 = vld [vmem:[#allocation4 + $0x40] sm:$0xff]
    %v271 = vld [vmem:[#allocation4 + $0x48] sm:$0xff]
    %v272 = vld [vmem:[#allocation4 + $0x50] sm:$0xff]
    %v273 = vld [vmem:[#allocation4 + $0x58] sm:$0xff]
    %v274 = vld [vmem:[#allocation4 + $0x60] sm:$0xff]
    %v275 = vld [vmem:[#allocation4 + $0x68] sm:$0xff]
    %v276 = vld [vmem:[#allocation4 + $0x70] sm:$0xff]
    %v277 = vld [vmem:[#allocation4 + $0x78] sm:$0xff]
    %v278 = vld [vmem:[#allocation4 + $0x80] sm:$0xff]
    %v279 = vld [vmem:[#allocation4 + $0x88] sm:$0xff]
    %v280 = vld [vmem:[#allocation4 + $0x90] sm:$0xff]
    %v281 = vld [vmem:[#allocation4 + $0x98] sm:$0xff]
    %v282 = vld [vmem:[#allocation4 + $0xa0] sm:$0xff]
    %v283 = vld [vmem:[#allocation4 + $0xa8] sm:$0xff]
    %v284 = vld [vmem:[#allocation4 + $0xb0] sm:$0xff]
    %v285 = vld [vmem:[#allocation4 + $0xb8] sm:$0xff]
    %v286 = vld [vmem:[#allocation4 + $0xc0] sm:$0xff]
    %v287 = vld [vmem:[#allocation4 + $0xc8] sm:$0xff]
    %v288 = vld [vmem:[#allocation4 + $0xd0] sm:$0xff]
    %v289 = vld [vmem:[#allocation4 + $0xd8] sm:$0xff]
    %v290 = vld [vmem:[#allocation4 + $0xe0] sm:$0xff]
    %v291 = vld [vmem:[#allocation4 + $0xe8] sm:$0xff]
    %v292 = vld [vmem:[#allocation4 + $0xf0] sm:$0xff]
    %v293 = vld [vmem:[#allocation4 + $0xf8] sm:$0xff]
    %v326 = vunpack.c.l.b16 %v262
    %v327 = vunpack.c.h.b16 %v262
    %v328 = vunpack.c.l.b16 %v263
    %v329 = vunpack.c.h.b16 %v263
    %v330 = vunpack.c.l.b16 %v264
    %v331 = vunpack.c.h.b16 %v264
    %v332 = vunpack.c.l.b16 %v265
    %v333 = vunpack.c.h.b16 %v265
    %v334 = vunpack.c.l.b16 %v266
    %v335 = vunpack.c.h.b16 %v266
    %v336 = vunpack.c.l.b16 %v267
    %v337 = vunpack.c.h.b16 %v267
    %v338 = vunpack.c.l.b16 %v268
    %v339 = vunpack.c.h.b16 %v268
    %v340 = vunpack.c.l.b16 %v269
    %v341 = vunpack.c.h.b16 %v269
    %v342 = vunpack.c.l.b16 %v270
    %v343 = vunpack.c.h.b16 %v270
    %v344 = vunpack.c.l.b16 %v271
    %v345 = vunpack.c.h.b16 %v271
    %v346 = vunpack.c.l.b16 %v272
    %v347 = vunpack.c.h.b16 %v272
    %v348 = vunpack.c.l.b16 %v273
    %v349 = vunpack.c.h.b16 %v273
    %v350 = vunpack.c.l.b16 %v274
    %v351 = vunpack.c.h.b16 %v274
    %v352 = vunpack.c.l.b16 %v275
    %v353 = vunpack.c.h.b16 %v275
    %v354 = vunpack.c.l.b16 %v276
    %v355 = vunpack.c.h.b16 %v276
    %v356 = vunpack.c.l.b16 %v277
    %v357 = vunpack.c.h.b16 %v277
    %v358 = vunpack.c.l.b16 %v278
    %v359 = vunpack.c.h.b16 %v278
    %v360 = vunpack.c.l.b16 %v279
    %v361 = vunpack.c.h.b16 %v279
    %v362 = vunpack.c.l.b16 %v280
    %v363 = vunpack.c.h.b16 %v280
    %v364 = vunpack.c.l.b16 %v281
    %v365 = vunpack.c.h.b16 %v281
    %v366 = vunpack.c.l.b16 %v282
    %v367 = vunpack.c.h.b16 %v282
    %v368 = vunpack.c.l.b16 %v283
    %v369 = vunpack.c.h.b16 %v283
    %v370 = vunpack.c.l.b16 %v284
    %v371 = vunpack.c.h.b16 %v284
    %v372 = vunpack.c.l.b16 %v285
    %v373 = vunpack.c.h.b16 %v285
    %v374 = vunpack.c.l.b16 %v286
    %v375 = vunpack.c.h.b16 %v286
    %v376 = vunpack.c.l.b16 %v287
    %v377 = vunpack.c.h.b16 %v287
    %v378 = vunpack.c.l.b16 %v288
    %v379 = vunpack.c.h.b16 %v288
    %v380 = vunpack.c.l.b16 %v289
    %v381 = vunpack.c.h.b16 %v289
    %v382 = vunpack.c.l.b16 %v290
    %v383 = vunpack.c.h.b16 %v290
    %v384 = vunpack.c.l.b16 %v291
    %v385 = vunpack.c.h.b16 %v291
    %v386 = vunpack.c.l.b16 %v292
    %v387 = vunpack.c.h.b16 %v292
    %v388 = vunpack.c.l.b16 %v293
    %v389 = vunpack.c.h.b16 %v293
    %v390 = vpack.c.b16 %v328, %v326
    %v391 = vpack.c.b16 %v329, %v327
    %v392 = vpack.c.b16 %v332, %v330
    %v393 = vpack.c.b16 %v333, %v331
    %v394 = vpack.c.b16 %v336, %v334
    %v395 = vpack.c.b16 %v337, %v335
    %v396 = vpack.c.b16 %v340, %v338
    %v397 = vpack.c.b16 %v341, %v339
    %v398 = vpack.c.b16 %v344, %v342
    %v399 = vpack.c.b16 %v345, %v343
    %v400 = vpack.c.b16 %v348, %v346
    %v401 = vpack.c.b16 %v349, %v347
    %v402 = vpack.c.b16 %v352, %v350
    %v403 = vpack.c.b16 %v353, %v351
    %v404 = vpack.c.b16 %v356, %v354
    %v405 = vpack.c.b16 %v357, %v355
    %v406 = vpack.c.b16 %v360, %v358
    %v407 = vpack.c.b16 %v361, %v359
    %v408 = vpack.c.b16 %v364, %v362
    %v409 = vpack.c.b16 %v365, %v363
    %v410 = vpack.c.b16 %v368, %v366
    %v411 = vpack.c.b16 %v369, %v367
    %v412 = vpack.c.b16 %v372, %v370
    %v413 = vpack.c.b16 %v373, %v371
    %v414 = vpack.c.b16 %v376, %v374
    %v415 = vpack.c.b16 %v377, %v375
    %v416 = vpack.c.b16 %v380, %v378
    %v417 = vpack.c.b16 %v381, %v379
    %v418 = vpack.c.b16 %v384, %v382
    %v419 = vpack.c.b16 %v385, %v383
    %v420 = vpack.c.b16 %v388, %v386
    %v421 = vpack.c.b16 %v389, %v387
    %454 = vmatprep.subr.bf16.mxu0 %v405
    %455 = vmatpush1.bf16.msra.mxu0 %v404
    %456 = vmatprep.subr.bf16.mxu0 %v403
    %457 = vmatpush1.bf16.msra.mxu0 %v402
    %458 = vmatprep.subr.bf16.mxu0 %v401
    %459 = vmatpush1.bf16.msra.mxu0 %v400
    %460 = vmatprep.subr.bf16.mxu0 %v399
    %461 = vmatpush1.bf16.msra.mxu0 %v398
    %462 = vmatprep.subr.bf16.mxu0 %v397
    %463 = vmatpush1.bf16.msra.mxu0 %v396
    %464 = vmatprep.subr.bf16.mxu0 %v395
    %465 = vmatpush1.bf16.msra.mxu0 %v394
    %466 = vmatprep.subr.bf16.mxu0 %v393
    %467 = vmatpush1.bf16.msra.mxu0 %v392
    %468 = vmatprep.subr.bf16.mxu0 %v391
    %469 = vmatpush1.bf16.msra.mxu0 %v390
    %470 = vmatprep.subr.bf16.mxu0 %v421
    %471 = vmatpush2.bf16.msra.mxu0 %v420
    %472 = vmatprep.subr.bf16.mxu0 %v419
    %473 = vmatpush2.bf16.msra.mxu0 %v418
    %474 = vmatprep.subr.bf16.mxu0 %v417
    %475 = vmatpush2.bf16.msra.mxu0 %v416
    %476 = vmatprep.subr.bf16.mxu0 %v415
    %477 = vmatpush2.bf16.msra.mxu0 %v414
    %478 = vmatprep.subr.bf16.mxu0 %v413
    %479 = vmatpush2.bf16.msra.mxu0 %v412
    %480 = vmatprep.subr.bf16.mxu0 %v411
    %481 = vmatpush2.bf16.msra.mxu0 %v410
    %482 = vmatprep.subr.bf16.mxu0 %v409
    %483 = vmatpush2.bf16.msra.mxu0 %v408
    %484 = vmatprep.subr.bf16.mxu0 %v407
    %485 = vmatpush2.bf16.msra.mxu0 %v406
    %486 = vmatprep.mubr.bf16.mxu0 0
    %487 = vmatmul.mubr.bf16.gmra.mxu0 0
    %v488 = vpop.f32.mrf.mxu0
    %v489 = vadd.f32 0.0, %v488
    %v490 = vpop.f32.mrf.mxu0
    %v491 = vadd.f32 0.0, %v490
    %v492 = vpop.f32.mrf.mxu0
    %v493 = vpop.f32.mrf.mxu0
    %494 = vdwg.mxu0
    %v495 = vadd.f32 %v211, %v489
    %v496 = vadd.f32 %v213, %v491
    %v497 = vtanh.pop %v495
    %v498 = vtanh.pop %v496
    %v499 = vpack.c.bf16 %v497, %v497
    %v500 = vpack.c.bf16 %v498, %v498
    %v501 = vsel %vm261, 1, 0
    %502 = vset.pattern.permute.xlu0 0
    %503 = vperm.xlu0 %502, %v501
    %v504 = vpop.permute.xlu0 %503
    %vm505 = vcmp.eq.s32.totalorder %v504, 1
    %vm506 = vmpackc.low %vm505, %vm505
    %v507 = vsel %vm506, 65537, 0
    %v508 = vunpack.c.l.b16 %v507
    %v509 = vpack.c.b16 %v508, %v508
    %vm510 = vcmp.ne.s16.totalorder %v509, 0
    %v511 = vsel %vm510, %v499, 0
    %v512 = vsel %vm510, %v500, 0
    %513 = vmatprep.subr.bf16.mxu0 %v405
    %514 = vmatpush1.bf16.msra.mxu0 %v404
    %515 = vmatprep.subr.bf16.mxu0 %v403
    %516 = vmatpush1.bf16.msra.mxu0 %v402
    %517 = vmatprep.subr.bf16.mxu0 %v401
    %518 = vmatpush1.bf16.msra.mxu0 %v400
    %519 = vmatprep.subr.bf16.mxu0 %v399
    %520 = vmatpush1.bf16.msra.mxu0 %v398
    %521 = vmatprep.subr.bf16.mxu0 %v397
    %522 = vmatpush1.bf16.msra.mxu0 %v396
    %523 = vmatprep.subr.bf16.mxu0 %v395
    %524 = vmatpush1.bf16.msra.mxu0 %v394
    %525 = vmatprep.subr.bf16.mxu0 %v393
    %526 = vmatpush1.bf16.msra.mxu0 %v392
    %527 = vmatprep.subr.bf16.mxu0 %v391
    %528 = vmatpush1.bf16.msra.mxu0 %v390
    %529 = vmatprep.subr.bf16.mxu0 %v421
    %530 = vmatpush2.bf16.msra.mxu0 %v420
    %531 = vmatprep.subr.bf16.mxu0 %v419
    %532 = vmatpush2.bf16.msra.mxu0 %v418
    %533 = vmatprep.subr.bf16.mxu0 %v417
    %534 = vmatpush2.bf16.msra.mxu0 %v416
    %535 = vmatprep.subr.bf16.mxu0 %v415
    %536 = vmatpush2.bf16.msra.mxu0 %v414
    %537 = vmatprep.subr.bf16.mxu0 %v413
    %538 = vmatpush2.bf16.msra.mxu0 %v412
    %539 = vmatprep.subr.bf16.mxu0 %v411
    %540 = vmatpush2.bf16.msra.mxu0 %v410
    %541 = vmatprep.subr.bf16.mxu0 %v409
    %542 = vmatpush2.bf16.msra.mxu0 %v408
    %543 = vmatprep.subr.bf16.mxu0 %v407
    %544 = vmatpush2.bf16.msra.mxu0 %v406
    %545 = vmatprep.mubr.bf16.mxu0 %v512
    %546 = vmatmul.mubr.bf16.gmra.mxu0 %v511
    %v547 = vpop.f32.mrf.mxu0
    %v548 = vadd.f32 0.0, %v547
    %v549 = vpop.f32.mrf.mxu0
    %v550 = vadd.f32 0.0, %v549
    %v551 = vpop.f32.mrf.mxu0
    %v552 = vpop.f32.mrf.mxu0
    %553 = vdwg.mxu0
    %v554 = vadd.f32 %v217, %v548
    %v555 = vadd.f32 %v219, %v550
    %v556 = vtanh.pop %v554
    %v557 = vtanh.pop %v555
    %v558 = vpack.c.bf16 %v556, %v556
    %v559 = vpack.c.bf16 %v557, %v557
    %560 = vset.pattern.permute.xlu0 1
    %561 = vperm.xlu0 %560, %v501
    %v562 = vpop.permute.xlu0 %561
    %vm563 = vcmp.eq.s32.totalorder %v562, 1
    %vm564 = vmpackc.low %vm563, %vm563
    %v565 = vsel %vm564, 65537, 0
    %v566 = vunpack.c.l.b16 %v565
    %v567 = vpack.c.b16 %v566, %v566
    %vm568 = vcmp.ne.s16.totalorder %v567, 0
    %v569 = vsel %vm568, %v558, %v511
    %v570 = vsel %vm568, %v559, %v512
    %571 = vmatprep.subr.bf16.mxu0 %v405
    %572 = vmatpush1.bf16.msra.mxu0 %v404
    %573 = vmatprep.subr.bf16.mxu0 %v403
    %574 = vmatpush1.bf16.msra.mxu0 %v402
    %575 = vmatprep.subr.bf16.mxu0 %v401
    %576 = vmatpush1.bf16.msra.mxu0 %v400
    %577 = vmatprep.subr.bf16.mxu0 %v399
    %578 = vmatpush1.bf16.msra.mxu0 %v398
    %579 = vmatprep.subr.bf16.mxu0 %v397
    %580 = vmatpush1.bf16.msra.mxu0 %v396
    %581 = vmatprep.subr.bf16.mxu0 %v395
    %582 = vmatpush1.bf16.msra.mxu0 %v394
    %583 = vmatprep.subr.bf16.mxu0 %v393
    %584 = vmatpush1.bf16.msra.mxu0 %v392
    %585 = vmatprep.subr.bf16.mxu0 %v391
    %586 = vmatpush1.bf16.msra.mxu0 %v390
    %587 = vmatprep.subr.bf16.mxu0 %v421
    %588 = vmatpush2.bf16.msra.mxu0 %v420
    %589 = vmatprep.subr.bf16.mxu0 %v419
    %590 = vmatpush2.bf16.msra.mxu0 %v418
    %591 = vmatprep.subr.bf16.mxu0 %v417
    %592 = vmatpush2.bf16.msra.mxu0 %v416
    %593 = vmatprep.subr.bf16.mxu0 %v415
    %594 = vmatpush2.bf16.msra.mxu0 %v414
    %595 = vmatprep.subr.bf16.mxu0 %v413
    %596 = vmatpush2.bf16.msra.mxu0 %v412
    %597 = vmatprep.subr.bf16.mxu0 %v411
    %598 = vmatpush2.bf16.msra.mxu0 %v410
    %599 = vmatprep.subr.bf16.mxu0 %v409
    %600 = vmatpush2.bf16.msra.mxu0 %v408
    %601 = vmatprep.subr.bf16.mxu0 %v407
    %602 = vmatpush2.bf16.msra.mxu0 %v406
    %603 = vmatprep.mubr.bf16.mxu0 %v570
    %604 = vmatmul.mubr.bf16.gmra.mxu0 %v569
    %v605 = vpop.f32.mrf.mxu0
    %v606 = vadd.f32 0.0, %v605
    %v607 = vpop.f32.mrf.mxu0
    %v608 = vadd.f32 0.0, %v607
    %v609 = vpop.f32.mrf.mxu0
    %v610 = vpop.f32.mrf.mxu0
    %611 = vdwg.mxu0
    %v612 = vadd.f32 %v223, %v606
    %v613 = vadd.f32 %v225, %v608
    %v614 = vtanh.pop %v612
    %v615 = vtanh.pop %v613
    %v616 = vpack.c.bf16 %v614, %v614
    %v617 = vpack.c.bf16 %v615, %v615
    %618 = vset.pattern.permute.xlu0 2
    %619 = vperm.xlu0 %618, %v501
    %v620 = vpop.permute.xlu0 %619
    %vm621 = vcmp.eq.s32.totalorder %v620, 1
    %vm622 = vmpackc.low %vm621, %vm621
    %v623 = vsel %vm622, 65537, 0
    %v624 = vunpack.c.l.b16 %v623
    %v625 = vpack.c.b16 %v624, %v624
    %vm626 = vcmp.ne.s16.totalorder %v625, 0
    %v627 = vsel %vm626, %v616, %v569
    %v628 = vsel %vm626, %v617, %v570
    %629 = vmatprep.subr.bf16.mxu0 %v405
    %630 = vmatpush1.bf16.msra.mxu0 %v404
    %631 = vmatprep.subr.bf16.mxu0 %v403
    %632 = vmatpush1.bf16.msra.mxu0 %v402
    %633 = vmatprep.subr.bf16.mxu0 %v401
    %634 = vmatpush1.bf16.msra.mxu0 %v400
    %635 = vmatprep.subr.bf16.mxu0 %v399
    %636 = vmatpush1.bf16.msra.mxu0 %v398
    %637 = vmatprep.subr.bf16.mxu0 %v397
    %638 = vmatpush1.bf16.msra.mxu0 %v396
    %639 = vmatprep.subr.bf16.mxu0 %v395
    %640 = vmatpush1.bf16.msra.mxu0 %v394
    %641 = vmatprep.subr.bf16.mxu0 %v393
    %642 = vmatpush1.bf16.msra.mxu0 %v392
    %643 = vmatprep.subr.bf16.mxu0 %v391
    %644 = vmatpush1.bf16.msra.mxu0 %v390
    %645 = vmatprep.subr.bf16.mxu0 %v421
    %646 = vmatpush2.bf16.msra.mxu0 %v420
    %647 = vmatprep.subr.bf16.mxu0 %v419
    %648 = vmatpush2.bf16.msra.mxu0 %v418
    %649 = vmatprep.subr.bf16.mxu0 %v417
    %650 = vmatpush2.bf16.msra.mxu0 %v416
    %651 = vmatprep.subr.bf16.mxu0 %v415
    %652 = vmatpush2.bf16.msra.mxu0 %v414
    %653 = vmatprep.subr.bf16.mxu0 %v413
    %654 = vmatpush2.bf16.msra.mxu0 %v412
    %655 = vmatprep.subr.bf16.mxu0 %v411
    %656 = vmatpush2.bf16.msra.mxu0 %v410
    %657 = vmatprep.subr.bf16.mxu0 %v409
    %658 = vmatpush2.bf16.msra.mxu0 %v408
    %659 = vmatprep.subr.bf16.mxu0 %v407
    %660 = vmatpush2.bf16.msra.mxu0 %v406
    %661 = vmatprep.mubr.bf16.mxu0 %v628
    %662 = vmatmul.mubr.bf16.gmra.mxu0 %v627
    %v663 = vpop.f32.mrf.mxu0
    %v664 = vadd.f32 0.0, %v663
    %v665 = vpop.f32.mrf.mxu0
    %v666 = vadd.f32 0.0, %v665
    %v667 = vpop.f32.mrf.mxu0
    %v668 = vpop.f32.mrf.mxu0
    %669 = vdwg.mxu0
    %v670 = vadd.f32 %v229, %v664
    %v671 = vadd.f32 %v231, %v666
    %v672 = vtanh.pop %v670
    %v673 = vtanh.pop %v671
    %v674 = vpack.c.bf16 %v672, %v672
    %v675 = vpack.c.bf16 %v673, %v673
    %676 = vset.pattern.permute.xlu0 3
    %677 = vperm.xlu0 %676, %v501
    %v678 = vpop.permute.xlu0 %677
    %vm679 = vcmp.eq.s32.totalorder %v678, 1
    %vm680 = vmpackc.low %vm679, %vm679
    %v681 = vsel %vm680, 65537, 0
    %v682 = vunpack.c.l.b16 %v681
    %v683 = vpack.c.b16 %v682, %v682
    %vm684 = vcmp.ne.s16.totalorder %v683, 0
    %v685 = vsel %vm684, %v674, %v627
    %v686 = vsel %vm684, %v675, %v628
    %687 = vmatprep.subr.bf16.mxu0 %v405
    %688 = vmatpush1.bf16.msra.mxu0 %v404
    %689 = vmatprep.subr.bf16.mxu0 %v403
    %690 = vmatpush1.bf16.msra.mxu0 %v402
    %691 = vmatprep.subr.bf16.mxu0 %v401
    %692 = vmatpush1.bf16.msra.mxu0 %v400
    %693 = vmatprep.subr.bf16.mxu0 %v399
    %694 = vmatpush1.bf16.msra.mxu0 %v398
    %695 = vmatprep.subr.bf16.mxu0 %v397
    %696 = vmatpush1.bf16.msra.mxu0 %v396
    %697 = vmatprep.subr.bf16.mxu0 %v395
    %698 = vmatpush1.bf16.msra.mxu0 %v394
    %699 = vmatprep.subr.bf16.mxu0 %v393
    %700 = vmatpush1.bf16.msra.mxu0 %v392
    %701 = vmatprep.subr.bf16.mxu0 %v391
    %702 = vmatpush1.bf16.msra.mxu0 %v390
    %703 = vmatprep.subr.bf16.mxu0 %v421
    %704 = vmatpush2.bf16.msra.mxu0 %v420
    %705 = vmatprep.subr.bf16.mxu0 %v419
    %706 = vmatpush2.bf16.msra.mxu0 %v418
    %707 = vmatprep.subr.bf16.mxu0 %v417
    %708 = vmatpush2.bf16.msra.mxu0 %v416
    %709 = vmatprep.subr.bf16.mxu0 %v415
    %710 = vmatpush2.bf16.msra.mxu0 %v414
    %711 = vmatprep.subr.bf16.mxu0 %v413
    %712 = vmatpush2.bf16.msra.mxu0 %v412
    %713 = vmatprep.subr.bf16.mxu0 %v411
    %714 = vmatpush2.bf16.msra.mxu0 %v410
    %715 = vmatprep.subr.bf16.mxu0 %v409
    %716 = vmatpush2.bf16.msra.mxu0 %v408
    %717 = vmatprep.subr.bf16.mxu0 %v407
    %718 = vmatpush2.bf16.msra.mxu0 %v406
    %719 = vmatprep.mubr.bf16.mxu0 %v686
    %720 = vmatmul.mubr.bf16.gmra.mxu0 %v685
    %v721 = vpop.f32.mrf.mxu0
    %v722 = vadd.f32 0.0, %v721
    %v723 = vpop.f32.mrf.mxu0
    %v724 = vadd.f32 0.0, %v723
    %v725 = vpop.f32.mrf.mxu0
    %v726 = vpop.f32.mrf.mxu0
    %727 = vdwg.mxu0
    %v728 = vadd.f32 %v235, %v722
    %v729 = vadd.f32 %v237, %v724
    %v730 = vtanh.pop %v728
    %v731 = vtanh.pop %v729
    %v732 = vpack.c.bf16 %v730, %v730
    %v733 = vpack.c.bf16 %v731, %v731
    %734 = vset.pattern.permute.xlu0 4
    %735 = vperm.xlu0 %734, %v501
    %v736 = vpop.permute.xlu0 %735
    %vm737 = vcmp.eq.s32.totalorder %v736, 1
    %vm738 = vmpackc.low %vm737, %vm737
    %v739 = vsel %vm738, 65537, 0
    %v740 = vunpack.c.l.b16 %v739
    %v741 = vpack.c.b16 %v740, %v740
    %vm742 = vcmp.ne.s16.totalorder %v741, 0
    %v743 = vsel %vm742, %v732, %v685
    %v744 = vsel %vm742, %v733, %v686
    %745 = vmatprep.subr.bf16.mxu0 %v405
    %746 = vmatpush1.bf16.msra.mxu0 %v404
    %747 = vmatprep.subr.bf16.mxu0 %v403
    %748 = vmatpush1.bf16.msra.mxu0 %v402
    %749 = vmatprep.subr.bf16.mxu0 %v401
    %750 = vmatpush1.bf16.msra.mxu0 %v400
    %751 = vmatprep.subr.bf16.mxu0 %v399
    %752 = vmatpush1.bf16.msra.mxu0 %v398
    %753 = vmatprep.subr.bf16.mxu0 %v397
    %754 = vmatpush1.bf16.msra.mxu0 %v396
    %755 = vmatprep.subr.bf16.mxu0 %v395
    %756 = vmatpush1.bf16.msra.mxu0 %v394
    %757 = vmatprep.subr.bf16.mxu0 %v393
    %758 = vmatpush1.bf16.msra.mxu0 %v392
    %759 = vmatprep.subr.bf16.mxu0 %v391
    %760 = vmatpush1.bf16.msra.mxu0 %v390
    %761 = vmatprep.subr.bf16.mxu0 %v421
    %762 = vmatpush2.bf16.msra.mxu0 %v420
    %763 = vmatprep.subr.bf16.mxu0 %v419
    %764 = vmatpush2.bf16.msra.mxu0 %v418
    %765 = vmatprep.subr.bf16.mxu0 %v417
    %766 = vmatpush2.bf16.msra.mxu0 %v416
    %767 = vmatprep.subr.bf16.mxu0 %v415
    %768 = vmatpush2.bf16.msra.mxu0 %v414
    %769 = vmatprep.subr.bf16.mxu0 %v413
    %770 = vmatpush2.bf16.msra.mxu0 %v412
    %771 = vmatprep.subr.bf16.mxu0 %v411
    %772 = vmatpush2.bf16.msra.mxu0 %v410
    %773 = vmatprep.subr.bf16.mxu0 %v409
    %774 = vmatpush2.bf16.msra.mxu0 %v408
    %775 = vmatprep.subr.bf16.mxu0 %v407
    %776 = vmatpush2.bf16.msra.mxu0 %v406
    %777 = vmatprep.mubr.bf16.mxu0 %v744
    %778 = vmatmul.mubr.bf16.gmra.mxu0 %v743
    %v779 = vpop.f32.mrf.mxu0
    %v780 = vadd.f32 0.0, %v779
    %v781 = vpop.f32.mrf.mxu0
    %v782 = vadd.f32 0.0, %v781
    %v783 = vpop.f32.mrf.mxu0
    %v784 = vpop.f32.mrf.mxu0
    %785 = vdwg.mxu0
    %v786 = vadd.f32 %v241, %v780
    %v787 = vadd.f32 %v243, %v782
    %v788 = vtanh.pop %v786
    %v789 = vtanh.pop %v787
    %v790 = vpack.c.bf16 %v788, %v788
    %v791 = vpack.c.bf16 %v789, %v789
    %792 = vset.pattern.permute.xlu0 5
    %793 = vperm.xlu0 %792, %v501
    %v794 = vpop.permute.xlu0 %793
    %vm795 = vcmp.eq.s32.totalorder %v794, 1
    %vm796 = vmpackc.low %vm795, %vm795
    %v797 = vsel %vm796, 65537, 0
    %v798 = vunpack.c.l.b16 %v797
    %v799 = vpack.c.b16 %v798, %v798
    %vm800 = vcmp.ne.s16.totalorder %v799, 0
    %v801 = vsel %vm800, %v790, %v743
    %v802 = vsel %vm800, %v791, %v744
    %803 = vmatprep.subr.bf16.mxu0 %v405
    %804 = vmatpush1.bf16.msra.mxu0 %v404
    %805 = vmatprep.subr.bf16.mxu0 %v403
    %806 = vmatpush1.bf16.msra.mxu0 %v402
    %807 = vmatprep.subr.bf16.mxu0 %v401
    %808 = vmatpush1.bf16.msra.mxu0 %v400
    %809 = vmatprep.subr.bf16.mxu0 %v399
    %810 = vmatpush1.bf16.msra.mxu0 %v398
    %811 = vmatprep.subr.bf16.mxu0 %v397
    %812 = vmatpush1.bf16.msra.mxu0 %v396
    %813 = vmatprep.subr.bf16.mxu0 %v395
    %814 = vmatpush1.bf16.msra.mxu0 %v394
    %815 = vmatprep.subr.bf16.mxu0 %v393
    %816 = vmatpush1.bf16.msra.mxu0 %v392
    %817 = vmatprep.subr.bf16.mxu0 %v391
    %818 = vmatpush1.bf16.msra.mxu0 %v390
    %819 = vmatprep.subr.bf16.mxu0 %v421
    %820 = vmatpush2.bf16.msra.mxu0 %v420
    %821 = vmatprep.subr.bf16.mxu0 %v419
    %822 = vmatpush2.bf16.msra.mxu0 %v418
    %823 = vmatprep.subr.bf16.mxu0 %v417
    %824 = vmatpush2.bf16.msra.mxu0 %v416
    %825 = vmatprep.subr.bf16.mxu0 %v415
    %826 = vmatpush2.bf16.msra.mxu0 %v414
    %827 = vmatprep.subr.bf16.mxu0 %v413
    %828 = vmatpush2.bf16.msra.mxu0 %v412
    %829 = vmatprep.subr.bf16.mxu0 %v411
    %830 = vmatpush2.bf16.msra.mxu0 %v410
    %831 = vmatprep.subr.bf16.mxu0 %v409
    %832 = vmatpush2.bf16.msra.mxu0 %v408
    %833 = vmatprep.subr.bf16.mxu0 %v407
    %834 = vmatpush2.bf16.msra.mxu0 %v406
    %835 = vmatprep.mubr.bf16.mxu0 %v802
    %836 = vmatmul.mubr.bf16.gmra.mxu0 %v801
    %v837 = vpop.f32.mrf.mxu0
    %v838 = vadd.f32 0.0, %v837
    %v839 = vpop.f32.mrf.mxu0
    %v840 = vadd.f32 0.0, %v839
    %v841 = vpop.f32.mrf.mxu0
    %v842 = vpop.f32.mrf.mxu0
    %843 = vdwg.mxu0
    %v844 = vadd.f32 %v247, %v838
    %v845 = vadd.f32 %v249, %v840
    %v846 = vtanh.pop %v844
    %v847 = vtanh.pop %v845
    %v848 = vpack.c.bf16 %v846, %v846
    %v849 = vpack.c.bf16 %v847, %v847
    %850 = vset.pattern.permute.xlu0 6
    %851 = vperm.xlu0 %850, %v501
    %v852 = vpop.permute.xlu0 %851
    %vm853 = vcmp.eq.s32.totalorder %v852, 1
    %vm854 = vmpackc.low %vm853, %vm853
    %v855 = vsel %vm854, 65537, 0
    %v856 = vunpack.c.l.b16 %v855
    %v857 = vpack.c.b16 %v856, %v856
    %vm858 = vcmp.ne.s16.totalorder %v857, 0
    %v859 = vsel %vm858, %v848, %v801
    %v860 = vsel %vm858, %v849, %v802
    %861 = vmatprep.subr.bf16.mxu0 %v405
    %862 = vmatpush1.bf16.msra.mxu0 %v404
    %863 = vmatprep.subr.bf16.mxu0 %v403
    %864 = vmatpush1.bf16.msra.mxu0 %v402
    %865 = vmatprep.subr.bf16.mxu0 %v401
    %866 = vmatpush1.bf16.msra.mxu0 %v400
    %867 = vmatprep.subr.bf16.mxu0 %v399
    %868 = vmatpush1.bf16.msra.mxu0 %v398
    %869 = vmatprep.subr.bf16.mxu0 %v397
    %870 = vmatpush1.bf16.msra.mxu0 %v396
    %871 = vmatprep.subr.bf16.mxu0 %v395
    %872 = vmatpush1.bf16.msra.mxu0 %v394
    %873 = vmatprep.subr.bf16.mxu0 %v393
    %874 = vmatpush1.bf16.msra.mxu0 %v392
    %875 = vmatprep.subr.bf16.mxu0 %v391
    %876 = vmatpush1.bf16.msra.mxu0 %v390
    %877 = vmatprep.subr.bf16.mxu0 %v421
    %878 = vmatpush2.bf16.msra.mxu0 %v420
    %879 = vmatprep.subr.bf16.mxu0 %v419
    %880 = vmatpush2.bf16.msra.mxu0 %v418
    %881 = vmatprep.subr.bf16.mxu0 %v417
    %882 = vmatpush2.bf16.msra.mxu0 %v416
    %883 = vmatprep.subr.bf16.mxu0 %v415
    %884 = vmatpush2.bf16.msra.mxu0 %v414
    %885 = vmatprep.subr.bf16.mxu0 %v413
    %886 = vmatpush2.bf16.msra.mxu0 %v412
    %887 = vmatprep.subr.bf16.mxu0 %v411
    %888 = vmatpush2.bf16.msra.mxu0 %v410
    %889 = vmatprep.subr.bf16.mxu0 %v409
    %890 = vmatpush2.bf16.msra.mxu0 %v408
    %891 = vmatprep.subr.bf16.mxu0 %v407
    %892 = vmatpush2.bf16.msra.mxu0 %v406
    %893 = vmatprep.mubr.bf16.mxu0 %v860
    %894 = vmatmul.mubr.bf16.gmra.mxu0 %v859
    %v895 = vpop.f32.mrf.mxu0
    %v896 = vadd.f32 0.0, %v895
    %v897 = vpop.f32.mrf.mxu0
    %v898 = vadd.f32 0.0, %v897
    %v899 = vpop.f32.mrf.mxu0
    %v900 = vpop.f32.mrf.mxu0
    %901 = vdwg.mxu0
    %v902 = vadd.f32 %v253, %v896
    %v903 = vadd.f32 %v255, %v898
    %v904 = vtanh.pop %v902
    %v905 = vtanh.pop %v903
    %v906 = vpack.c.bf16 %v904, %v904
    %v907 = vpack.c.bf16 %v905, %v905
    %908 = vset.pattern.permute.xlu0 7
    %909 = vperm.xlu0 %908, %v501
    %v910 = vpop.permute.xlu0 %909
    %vm911 = vcmp.eq.s32.totalorder %v910, 1
    %vm912 = vmpackc.low %vm911, %vm911
    %v913 = vsel %vm912, 65537, 0
    %v914 = vunpack.c.l.b16 %v913
    %v915 = vpack.c.b16 %v914, %v914
    %vm916 = vcmp.ne.s16.totalorder %v915, 0
    %v917 = vsel %vm916, %v906, %v859
    %v918 = vsel %vm916, %v907, %v860
    %v919 = vld [vmem:[%s4] sm:$0xf]
    %v920 = vld [vmem:[%s4 + $0x4] sm:$0xf]
    %v921 = vld [vmem:[%s4 + $0x8] sm:$0xf]
    %v922 = vld [vmem:[%s4 + $0xc] sm:$0xf]
    %v923 = vld [vmem:[%s4 + $0x10] sm:$0xf]
    %v924 = vld [vmem:[%s4 + $0x14] sm:$0xf]
    %v925 = vld [vmem:[%s4 + $0x18] sm:$0xf]
    %v926 = vld [vmem:[%s4 + $0x1c] sm:$0xf]
    %v927 = vld [vmem:[%s4 + $0x20] sm:$0xf]
    %v928 = vld [vmem:[%s4 + $0x24] sm:$0xf]
    %v929 = vld [vmem:[%s4 + $0x28] sm:$0xf]
    %v930 = vld [vmem:[%s4 + $0x2c] sm:$0xf]
    %v931 = vld [vmem:[%s4 + $0x30] sm:$0xf]
    %v932 = vld [vmem:[%s4 + $0x34] sm:$0xf]
    %v933 = vld [vmem:[%s4 + $0x38] sm:$0xf]
    %v934 = vld [vmem:[%s4 + $0x3c] sm:$0xf]
    %v935 = vld [vmem:[%s4 + $0x40] sm:$0xf]
    %v936 = vld [vmem:[%s4 + $0x44] sm:$0xf]
    %v937 = vld [vmem:[%s4 + $0x48] sm:$0xf]
    %v938 = vld [vmem:[%s4 + $0x4c] sm:$0xf]
    %v939 = vld [vmem:[%s4 + $0x50] sm:$0xf]
    %v940 = vld [vmem:[%s4 + $0x54] sm:$0xf]
    %v941 = vld [vmem:[%s4 + $0x58] sm:$0xf]
    %v942 = vld [vmem:[%s4 + $0x5c] sm:$0xf]
    %v943 = vld [vmem:[%s4 + $0x60] sm:$0xf]
    %v944 = vld [vmem:[%s4 + $0x64] sm:$0xf]
    %v945 = vld [vmem:[%s4 + $0x68] sm:$0xf]
    %v946 = vld [vmem:[%s4 + $0x6c] sm:$0xf]
    %v947 = vld [vmem:[%s4 + $0x70] sm:$0xf]
    %v948 = vld [vmem:[%s4 + $0x74] sm:$0xf]
    %v949 = vld [vmem:[%s4 + $0x78] sm:$0xf]
    %v950 = vld [vmem:[%s4 + $0x7c] sm:$0xf]
    %v951 = vld [vmem:[%s5] sm:$0x1]
    %v953 = vlaneseq
    %v954 = vshrl.u32 %v953, 7
    %v955 = vsub.s32 0, %v954
    %v956 = vrot.slane %v951, %v955
    %v990 = vunpack.c.l.b16 %v919
    %v991 = vunpack.c.l.b16 %v920
    %v992 = vunpack.c.l.b16 %v921
    %v993 = vunpack.c.l.b16 %v922
    %v994 = vunpack.c.l.b16 %v923
    %v995 = vunpack.c.l.b16 %v924
    %v996 = vunpack.c.l.b16 %v925
    %v997 = vunpack.c.l.b16 %v926
    %v998 = vunpack.c.l.b16 %v927
    %v999 = vunpack.c.l.b16 %v928
    %v1000 = vunpack.c.l.b16 %v929
    %v1001 = vunpack.c.l.b16 %v930
    %v1002 = vunpack.c.l.b16 %v931
    %v1003 = vunpack.c.l.b16 %v932
    %v1004 = vunpack.c.l.b16 %v933
    %v1005 = vunpack.c.l.b16 %v934
    %v1006 = vunpack.c.l.b16 %v935
    %v1007 = vunpack.c.l.b16 %v936
    %v1008 = vunpack.c.l.b16 %v937
    %v1009 = vunpack.c.l.b16 %v938
    %v1010 = vunpack.c.l.b16 %v939
    %v1011 = vunpack.c.l.b16 %v940
    %v1012 = vunpack.c.l.b16 %v941
    %v1013 = vunpack.c.l.b16 %v942
    %v1014 = vunpack.c.l.b16 %v943
    %v1015 = vunpack.c.l.b16 %v944
    %v1016 = vunpack.c.l.b16 %v945
    %v1017 = vunpack.c.l.b16 %v946
    %v1018 = vunpack.c.l.b16 %v947
    %v1019 = vunpack.c.l.b16 %v948
    %v1020 = vunpack.c.l.b16 %v949
    %v1021 = vunpack.c.l.b16 %v950
    %v1022 = vpack.c.b16 %v991, %v990
    %v1023 = vpack.c.b16 %v993, %v992
    %v1024 = vpack.c.b16 %v995, %v994
    %v1025 = vpack.c.b16 %v997, %v996
    %v1026 = vpack.c.b16 %v999, %v998
    %v1027 = vpack.c.b16 %v1001, %v1000
    %v1028 = vpack.c.b16 %v1003, %v1002
    %v1029 = vpack.c.b16 %v1005, %v1004
    %v1030 = vpack.c.b16 %v1007, %v1006
    %v1031 = vpack.c.b16 %v1009, %v1008
    %v1032 = vpack.c.b16 %v1011, %v1010
    %v1033 = vpack.c.b16 %v1013, %v1012
    %v1034 = vpack.c.b16 %v1015, %v1014
    %v1035 = vpack.c.b16 %v1017, %v1016
    %v1036 = vpack.c.b16 %v1019, %v1018
    %v1037 = vpack.c.b16 %v1021, %v1020
    %1054 = vmatprep.subr.bf16.mxu0 0
    %1055 = vmatpush1.bf16.msra.mxu0 %v1029
    %1056 = vmatprep.subr.bf16.mxu0 0
    %1057 = vmatpush1.bf16.msra.mxu0 %v1028
    %1058 = vmatprep.subr.bf16.mxu0 0
    %1059 = vmatpush1.bf16.msra.mxu0 %v1027
    %1060 = vmatprep.subr.bf16.mxu0 0
    %1061 = vmatpush1.bf16.msra.mxu0 %v1026
    %1062 = vmatprep.subr.bf16.mxu0 0
    %1063 = vmatpush1.bf16.msra.mxu0 %v1025
    %1064 = vmatprep.subr.bf16.mxu0 0
    %1065 = vmatpush1.bf16.msra.mxu0 %v1024
    %1066 = vmatprep.subr.bf16.mxu0 0
    %1067 = vmatpush1.bf16.msra.mxu0 %v1023
    %1068 = vmatprep.subr.bf16.mxu0 0
    %1069 = vmatpush1.bf16.msra.mxu0 %v1022
    %1070 = vmatprep.subr.bf16.mxu0 0
    %1071 = vmatpush2.bf16.msra.mxu0 %v1037
    %1072 = vmatprep.subr.bf16.mxu0 0
    %1073 = vmatpush2.bf16.msra.mxu0 %v1036
    %1074 = vmatprep.subr.bf16.mxu0 0
    %1075 = vmatpush2.bf16.msra.mxu0 %v1035
    %1076 = vmatprep.subr.bf16.mxu0 0
    %1077 = vmatpush2.bf16.msra.mxu0 %v1034
    %1078 = vmatprep.subr.bf16.mxu0 0
    %1079 = vmatpush2.bf16.msra.mxu0 %v1033
    %1080 = vmatprep.subr.bf16.mxu0 0
    %1081 = vmatpush2.bf16.msra.mxu0 %v1032
    %1082 = vmatprep.subr.bf16.mxu0 0
    %1083 = vmatpush2.bf16.msra.mxu0 %v1031
    %1084 = vmatprep.subr.bf16.mxu0 0
    %1085 = vmatpush2.bf16.msra.mxu0 %v1030
    %1086 = vmatprep.mubr.bf16.mxu0 %v918
    %1087 = vmatmul.mubr.bf16.gmra.mxu0 %v917
    %v1088 = vpop.f32.mrf.mxu0
    %v1089 = vadd.f32 %v956, %v1088
    %v1090 = vpop.f32.mrf.mxu0
    %v1091 = vpop.f32.mrf.mxu0
    %v1092 = vpop.f32.mrf.mxu0
    %1093 = vdwg.mxu0
    %v1094 = vxor.u32 %v1089, 2147483648
    %v1095 = vmul.f32 %v1094, 1.442695
    %v1096 = vpow.pop %v1095
    %v1097 = vadd.f32 %v1096, 1.0
    %v1098 = vrcp.pop %v1097
    %v1099 = vmul.f32 1.0, %v1098
    %1100 = vst [vmem:[%s6] sm:$0xff] %v1099
    // Predicated region
    $region34: #{my_model_forward.1} parent=1 // pred_check
      _
    $region35: #{my_model_forward.1} parent=1 // pred_check_branch
      %1102 = sbr.rel (0) target = $region37
    $region36: #{my_model_forward.1} parent=1 // pred_region
      _
    $region37: #{my_model_forward.1} parent=1 // pred_fallthru
      _
    // Predicated region
    $region38: #{my_model_forward.1} parent=1 // pred_check
      _
    $region39: #{my_model_forward.1} parent=1 // pred_check_branch
      %1104 = sbr.rel (0) target = $region41
    $region40: #{my_model_forward.1} parent=1 // pred_region
      _
    $region41: #{my_model_forward.1} parent=1 // pred_fallthru
      _
    %1105 = vsyncpa [#allocation3], 1
    %1106 = vsyncpa [#allocation5], 1

</llo_original>
